<compile_context>
chip_gen: v7x
topology: tpu7x:2x2x1
jax: 0.10.0
libtpu: 0.0.40
codegen_flags: <defaults>
</compile_context>

<pallas_src>
import jax
import jax.numpy as jnp
import numpy as np
from jax import lax
from jax.experimental import pallas as pl
from jax.experimental.pallas import tpu as pltpu


# ---------------------------------------------------------------------------
# Fused Pallas kernel
# ---------------------------------------------------------------------------
def _boundary_ce_kernel(x_ref, d_ref, y_ref, out_ref):
    """Fused channel-softmax + boundary/CE partial sums for one (batch, tile).

    x_ref  : (C, T)     logits, native dtype (cast to f32 per 128-lane chunk)
    d_ref  : (C, T)     boundary-distance map, native dtype (bf16 recommended)
    y_ref  : (1, T)     int32 labels
    out_ref: (C+1, 128) f32 lane-folded partial sums:
             rows 0..C-1 -> sum of softmax(x) * bdistmap
             row  C      -> sum of log(softmax(x)[label] + 1e-15)
    """
    C, T = x_ref.shape
    n = T // 128                                       # static: T is a multiple of 128
    ch = lax.broadcasted_iota(jnp.int32, (C, 128), 0)  # hoisted channel iota

    bd_acc = jnp.zeros((C, 128), jnp.float32)
    ce_acc = jnp.zeros((1, 128), jnp.float32)
    for j in range(n):                                 # static unroll, lane-aligned chunks
        sl = slice(128 * j, 128 * (j + 1))
        xc = x_ref[:, sl].astype(jnp.float32)          # (C, 128) in-kernel cast (free, mem-bound)
        dc = d_ref[:, sl].astype(jnp.float32)          # (C, 128)
        yc = y_ref[:, sl]                              # (1, 128) int32

        # channel softmax pieces: ONE reciprocal per pixel (EUP slot, approx ok: den >= 1)
        m = jnp.max(xc, axis=0, keepdims=True)         # (1, 128)
        e = jnp.exp(xc - m)                            # (C, 128)
        den = jnp.sum(e, axis=0, keepdims=True)        # (1, 128)
        inv = pl.reciprocal(den, approx=True)

        # boundary term: softmax(x) * bdistmap, folded in place (no (C,T) temp)
        bd_acc = bd_acc + (e * dc) * inv

        # CE term: log(softmax(x)[label] + 1e-15)
        e_lbl = jnp.sum(jnp.where(ch == yc, e, 0.0), axis=0, keepdims=True)  # (1, 128)
        ce_acc = ce_acc + jnp.log(e_lbl * inv + 1e-15)

    # single fused (C+1, 128) store per grid step (no extra 1-sublane masked store)
    out_ref[...] = jnp.concatenate([bd_acc, ce_acc], axis=0)


# ---------------------------------------------------------------------------
# Tiling / VMEM heuristics
# ---------------------------------------------------------------------------
_STEP_PAYLOAD_TARGET = 3 << 20   # ~3 MiB of streamed input per grid step


def _vmem_cap_bytes():
    """Generation-aware scoped-VMEM cap: ~64 MiB on 128-MiB parts (v5e/v6e),
    ~44 MiB on 64-MiB parts (v7x), conservative 32 MiB if the query fails."""
    try:
        phys = getattr(pltpu.get_tpu_info(), "vmem_capacity_bytes", None)
    except Exception:
        phys = None
    if phys is None:
        return 32 << 20
    return (64 << 20) if phys >= (100 << 20) else (44 << 20)


def _largest_tile(hw, t_max):
    """Largest multiple-of-128 divisor of `hw` that is <= max(t_max, 128)."""
    t = min(hw, max(128, int(t_max)))
    t -= t % 128
    while t >= 128:
        if hw % t == 0:
            return t
        t -= 128
    return 128


# ---------------------------------------------------------------------------
# Pallas hot path wrapper
# ---------------------------------------------------------------------------
def boundary_equal_ce_loss_pallas(x, y_, bdistmap):
    """CELoss(x, y_) + BoundaryLoss(x, y_) with a single fused Pallas hot path.

    x        : [B, C, H, W] float logits (any float dtype; streamed as-is).
    y_       : [B, 1, H, W] integer labels.
    bdistmap : [B, C, H, W] boundary-distance map (any float dtype; bf16 recommended).
    """
    B, C, H, W = x.shape
    HW = H * W
    assert HW % 128 == 0, "H*W must be a multiple of 128 for the TPU kernel"

    x3 = x.reshape(B, C, HW)                      # native dtype (no wrapper upcast)
    d3 = bdistmap.reshape(B, C, HW)               # native dtype (bf16 -> half the bytes)
    y3 = y_.reshape(B, 1, HW).astype(jnp.int32)

    # streamed bytes per spatial pixel
    per_lane = C * (x3.dtype.itemsize + d3.dtype.itemsize) + 4

    vmem_cap = _vmem_cap_bytes()
    headroom = 8 << 20
    t_budget = (vmem_cap - headroom) // (2 * per_lane)   # double-buffered input tiles
    T = _largest_tile(HW, min(t_budget, _STEP_PAYLOAD_TARGET // per_lane))
    if B * (HW // T) < 2 and HW >= 256:
        T = _largest_tile(HW, HW // 2)            # >= 2 grid steps -> both TensorCores busy
    NT = HW // T

    bytes_per_step = per_lane * T + (C + 1) * 128 * 4
    vmem_limit = int(min(max(2 * bytes_per_step + headroom, 16 << 20), vmem_cap))

    part = pl.pallas_call(
        _boundary_ce_kernel,
        out_shape=jax.ShapeDtypeStruct((B, NT, C + 1, 128), jnp.float32),
        grid_spec=pltpu.PrefetchScalarGridSpec(
            num_scalar_prefetch=0,
            grid=(B, NT),
            in_specs=[
                pl.BlockSpec((None, C, T), lambda b, t: (b, 0, t)),
                pl.BlockSpec((None, C, T), lambda b, t: (b, 0, t)),
                pl.BlockSpec((None, 1, T), lambda b, t: (b, 0, t)),
            ],
            out_specs=pl.BlockSpec((None, None, C + 1, 128),
                                   lambda b, t: (b, t, 0, 0)),
        ),
        compiler_params=pltpu.CompilerParams(
            # every (b, t) grid point writes its own partial block -> fully parallel
            dimension_semantics=("parallel", "parallel"),
            vmem_limit_bytes=vmem_limit,
        ),
    )(x3, d3, y3)

    # Final reduction + means in plain JAX (tiny f32 partials).
    boundary_loss = jnp.sum(part[:, :, :C, :]) / jnp.float32(B * C * HW)
    ce_loss = -jnp.sum(part[:, :, C, :]) / jnp.float32(B * HW)
    return ce_loss + boundary_loss


# ---------------------------------------------------------------------------
# Label preprocessing (plain-JAX glue; no Pallas equivalent)
# ---------------------------------------------------------------------------
def compute_bdistmap(y_, num_classes, H, W):
    """Reproduces the numpy EDT loop of the torch reference (label-only glue).

    y_: [B, 1, H, W] integer labels.  Returns bdistmap [B, C, H, W] bfloat16 with
    bdistmap[b, c] = edt(~posmask)*~posmask - edt(posmask)*posmask, using an
    exact brute-force Euclidean distance transform (O(HW^2): demo-scale only).
    """
    onehot = jax.nn.one_hot(y_[:, 0], num_classes, axis=1, dtype=jnp.float32)  # [B,C,H,W]
    yy, xx = jnp.meshgrid(jnp.arange(H), jnp.arange(W), indexing="ij")
    coords = jnp.stack([yy.ravel(), xx.ravel()], axis=-1).astype(jnp.float32)   # [HW,2]
    d2 = jnp.sum((coords[:, None, :] - coords[None, :, :]) ** 2, axis=-1)       # [HW,HW]
    big = jnp.float32(1e12)

    def edt(mask_flat):
        # distance from each True pixel to the nearest False pixel
        dmin = jnp.min(jnp.where(mask_flat[None, :], big, d2), axis=1)
        return jnp.where(mask_flat, jnp.sqrt(dmin), 0.0)

    def per_channel(mask2d):
        posmask = mask2d.reshape(-1) > 0.5
        negmask = ~posmask
        dist_neg = edt(negmask)
        dist_pos = edt(posmask)
        bd = (dist_neg * negmask.astype(jnp.float32)
              - dist_pos * posmask.astype(jnp.float32))
        # TODO(synk): the torch reference reuses stale dist_neg/dist_pos when a
        # channel has no positive pixels (a latent bug); we return zeros instead.
        bd = jnp.where(jnp.any(posmask), bd, jnp.zeros_like(bd))
        return bd.reshape(H, W)

    # emit bf16: halves the dominant HBM stream into the (mem-bound) kernel
    return jax.vmap(jax.vmap(per_channel))(onehot).astype(jnp.bfloat16)


def boundary_equal_ce_loss(x, y_, e=None):
    """Forward of BoundaryEqualCELoss (`e` is accepted but unused, as in torch)."""
    B, C, H, W = x.shape
    bdistmap = compute_bdistmap(y_, C, H, W)      # plain-JAX label preprocessing (bf16)
    return boundary_equal_ce_loss_pallas(x, y_, bdistmap)


if __name__ == "__main__":
    key = jax.random.PRNGKey(0)
    B, C, H, W = 2, 4, 16, 16
    kx, ky = jax.random.split(key)
    x = jax.random.normal(kx, (B, C, H, W), dtype=jnp.float32)          # logits
    y_ = jax.random.randint(ky, (B, 1, H, W), 0, C, dtype=jnp.int32)    # labels
    e = jnp.float32(1.0)                                                # unused (as in torch)

    loss = boundary_equal_ce_loss(x, y_, e)                             # Pallas hot path
    loss = jax.block_until_ready(loss)

    # silent sanity check against a pure-JAX reference of the full loss
    p = jax.nn.softmax(x, axis=1)
    onehot = jax.nn.one_hot(y_[:, 0], C, axis=1, dtype=jnp.float32)
    bdistmap = compute_bdistmap(y_, C, H, W).astype(jnp.float32)        # same bf16 values
    ce_ref = -jnp.mean(jnp.sum(onehot * jnp.log(p + 1e-15), axis=1))
    bd_ref = jnp.mean(p * bdistmap)
    ref = ce_ref + bd_ref
    np.testing.assert_allclose(np.asarray(loss), np.asarray(ref), rtol=1e-3, atol=1e-3)

    print("KERNEL_OK")
</pallas_src>

<mosaic_0001>
module attributes {stable_mosaic.version = 11 : i64} {
  func.func @_boundary_ce_kernel(%arg0: i32, %arg1: i32, %arg2: memref<1x4x256xf32, #tpu.memory_space<vmem>>, %arg3: memref<1x4x256xbf16, #tpu.memory_space<vmem>>, %arg4: memref<1x1x256xi32, #tpu.memory_space<vmem>>, %arg5: memref<1x1x5x128xf32, #tpu.memory_space<vmem>>) attributes {dimension_semantics = [#tpu.dimension_semantics<parallel>, #tpu.dimension_semantics<parallel>], iteration_bounds = array<i64: 2, 1>, scalar_prefetch = 0 : i64, scratch_operands = 0 : i64, tpu.core_type = #tpu.core_type<tc>, window_params = [{transform_indices = @transform_0, window_bounds = array<i64: 1, 4, 256>}, {transform_indices = @transform_1, window_bounds = array<i64: 1, 4, 256>}, {transform_indices = @transform_2, window_bounds = array<i64: 1, 1, 256>}, {transform_indices = @transform_3, window_bounds = array<i64: 1, 1, 5, 128>}]} {
    %0 = tpu.iota {dimensions = array<i32: 0>} : vector<4x128xi32>
    %cst = arith.constant 0.000000e+00 : f32
    %1 = vector.broadcast %cst : f32 to vector<4x128xf32>
    %cst_0 = arith.constant 0.000000e+00 : f32
    %2 = vector.broadcast %cst_0 : f32 to vector<1x128xf32>
    %c0 = arith.constant 0 : index
    %c0_1 = arith.constant 0 : index
    %c0_2 = arith.constant 0 : index
    %3 = vector.load %arg2[%c0, %c0_1, %c0_2] : memref<1x4x256xf32, #tpu.memory_space<vmem>>, vector<1x4x128xf32>
    %4 = vector.shape_cast %3 : vector<1x4x128xf32> to vector<4x128xf32>
    %c0_3 = arith.constant 0 : index
    %c0_4 = arith.constant 0 : index
    %c0_5 = arith.constant 0 : index
    %5 = vector.load %arg3[%c0_3, %c0_4, %c0_5] : memref<1x4x256xbf16, #tpu.memory_space<vmem>>, vector<1x4x128xbf16>
    %6 = vector.shape_cast %5 : vector<1x4x128xbf16> to vector<4x128xbf16>
    %7 = arith.extf %6 : vector<4x128xbf16> to vector<4x128xf32>
    %c0_6 = arith.constant 0 : index
    %c0_7 = arith.constant 0 : index
    %c0_8 = arith.constant 0 : index
    %8 = vector.load %arg4[%c0_6, %c0_7, %c0_8] : memref<1x1x256xi32, #tpu.memory_space<vmem>>, vector<1x1x128xi32>
    %9 = vector.shape_cast %8 : vector<1x1x128xi32> to vector<1x128xi32>
    %cst_9 = arith.constant dense<0xFF800000> : vector<128xf32>
    %10 = vector.multi_reduction <maximumf>, %4, %cst_9 [0] : vector<4x128xf32> to vector<128xf32>
    %11 = vector.shape_cast %10 : vector<128xf32> to vector<1x128xf32>
    %12 = vector.broadcast %11 : vector<1x128xf32> to vector<4x128xf32>
    %13 = arith.subf %4, %12 : vector<4x128xf32>
    %14 = math.exp %13 : vector<4x128xf32>
    %cst_10 = arith.constant dense<0.000000e+00> : vector<128xf32>
    %15 = vector.multi_reduction <add>, %14, %cst_10 [0] : vector<4x128xf32> to vector<128xf32>
    %16 = vector.shape_cast %15 : vector<128xf32> to vector<1x128xf32>
    %17 = tpu.reciprocal %16 {approx = true} : vector<1x128xf32> -> vector<1x128xf32>
    %18 = arith.mulf %14, %7 : vector<4x128xf32>
    %19 = vector.broadcast %17 : vector<1x128xf32> to vector<4x128xf32>
    %20 = arith.mulf %18, %19 : vector<4x128xf32>
    %21 = arith.addf %1, %20 : vector<4x128xf32>
    %22 = vector.broadcast %9 : vector<1x128xi32> to vector<4x128xi32>
    %23 = arith.cmpi eq, %0, %22 : vector<4x128xi32>
    %cst_11 = arith.constant 0.000000e+00 : f32
    %24 = vector.broadcast %cst_11 : f32 to vector<4x128xf32>
    %25 = arith.select %23, %14, %24 : vector<4x128xi1>, vector<4x128xf32>
    %cst_12 = arith.constant dense<0.000000e+00> : vector<128xf32>
    %26 = vector.multi_reduction <add>, %25, %cst_12 [0] : vector<4x128xf32> to vector<128xf32>
    %27 = vector.shape_cast %26 : vector<128xf32> to vector<1x128xf32>
    %28 = arith.mulf %27, %17 : vector<1x128xf32>
    %cst_13 = arith.constant 1.000000e-15 : f32
    %29 = vector.broadcast %cst_13 : f32 to vector<1x128xf32>
    %30 = arith.addf %28, %29 : vector<1x128xf32>
    %31 = math.log %30 : vector<1x128xf32>
    %32 = arith.addf %2, %31 : vector<1x128xf32>
    %c0_14 = arith.constant 0 : index
    %c0_15 = arith.constant 0 : index
    %c128 = arith.constant 128 : index
    %33 = vector.load %arg2[%c0_14, %c0_15, %c128] : memref<1x4x256xf32, #tpu.memory_space<vmem>>, vector<1x4x128xf32>
    %34 = vector.shape_cast %33 : vector<1x4x128xf32> to vector<4x128xf32>
    %c0_16 = arith.constant 0 : index
    %c0_17 = arith.constant 0 : index
    %c128_18 = arith.constant 128 : index
    %35 = vector.load %arg3[%c0_16, %c0_17, %c128_18] : memref<1x4x256xbf16, #tpu.memory_space<vmem>>, vector<1x4x128xbf16>
    %36 = vector.shape_cast %35 : vector<1x4x128xbf16> to vector<4x128xbf16>
    %37 = arith.extf %36 : vector<4x128xbf16> to vector<4x128xf32>
    %c0_19 = arith.constant 0 : index
    %c0_20 = arith.constant 0 : index
    %c128_21 = arith.constant 128 : index
    %38 = vector.load %arg4[%c0_19, %c0_20, %c128_21] : memref<1x1x256xi32, #tpu.memory_space<vmem>>, vector<1x1x128xi32>
    %39 = vector.shape_cast %38 : vector<1x1x128xi32> to vector<1x128xi32>
    %cst_22 = arith.constant dense<0xFF800000> : vector<128xf32>
    %40 = vector.multi_reduction <maximumf>, %34, %cst_22 [0] : vector<4x128xf32> to vector<128xf32>
    %41 = vector.shape_cast %40 : vector<128xf32> to vector<1x128xf32>
    %42 = vector.broadcast %41 : vector<1x128xf32> to vector<4x128xf32>
    %43 = arith.subf %34, %42 : vector<4x128xf32>
    %44 = math.exp %43 : vector<4x128xf32>
    %cst_23 = arith.constant dense<0.000000e+00> : vector<128xf32>
    %45 = vector.multi_reduction <add>, %44, %cst_23 [0] : vector<4x128xf32> to vector<128xf32>
    %46 = vector.shape_cast %45 : vector<128xf32> to vector<1x128xf32>
    %47 = tpu.reciprocal %46 {approx = true} : vector<1x128xf32> -> vector<1x128xf32>
    %48 = arith.mulf %44, %37 : vector<4x128xf32>
    %49 = vector.broadcast %47 : vector<1x128xf32> to vector<4x128xf32>
    %50 = arith.mulf %48, %49 : vector<4x128xf32>
    %51 = arith.addf %21, %50 : vector<4x128xf32>
    %52 = vector.broadcast %39 : vector<1x128xi32> to vector<4x128xi32>
    %53 = arith.cmpi eq, %0, %52 : vector<4x128xi32>
    %cst_24 = arith.constant 0.000000e+00 : f32
    %54 = vector.broadcast %cst_24 : f32 to vector<4x128xf32>
    %55 = arith.select %53, %44, %54 : vector<4x128xi1>, vector<4x128xf32>
    %cst_25 = arith.constant dense<0.000000e+00> : vector<128xf32>
    %56 = vector.multi_reduction <add>, %55, %cst_25 [0] : vector<4x128xf32> to vector<128xf32>
    %57 = vector.shape_cast %56 : vector<128xf32> to vector<1x128xf32>
    %58 = arith.mulf %57, %47 : vector<1x128xf32>
    %cst_26 = arith.constant 1.000000e-15 : f32
    %59 = vector.broadcast %cst_26 : f32 to vector<1x128xf32>
    %60 = arith.addf %58, %59 : vector<1x128xf32>
    %61 = math.log %60 : vector<1x128xf32>
    %62 = arith.addf %32, %61 : vector<1x128xf32>
    %63 = tpu.concatenate %51, %62 in 0 : vector<4x128xf32>, vector<1x128xf32> -> vector<5x128xf32>
    %c0_27 = arith.constant 0 : index
    %c0_28 = arith.constant 0 : index
    %c0_29 = arith.constant 0 : index
    %c0_30 = arith.constant 0 : index
    %64 = vector.load %arg5[%c0_27, %c0_28, %c0_29, %c0_30] : memref<1x1x5x128xf32, #tpu.memory_space<vmem>>, vector<1x1x5x128xf32>
    %65 = vector.shape_cast %64 : vector<1x1x5x128xf32> to vector<5x128xf32>
    %66 = vector.shape_cast %63 : vector<5x128xf32> to vector<1x1x5x128xf32>
    tpu.vector_store %arg5[%c0_27, %c0_28, %c0_29, %c0_30], %66 {strides = array<i32>} : memref<1x1x5x128xf32, #tpu.memory_space<vmem>>, vector<1x1x5x128xf32>,
    return
  }
  func.func @transform_0(%arg0: i32, %arg1: i32) -> (i32, i32, i32) {
    %c0_i32 = arith.constant 0 : i32
    %c0_i32_0 = arith.constant 0 : i32
    return %arg0, %c0_i32, %arg1 : i32, i32, i32
  }
  func.func @transform_1(%arg0: i32, %arg1: i32) -> (i32, i32, i32) {
    %c0_i32 = arith.constant 0 : i32
    %c0_i32_0 = arith.constant 0 : i32
    return %arg0, %c0_i32, %arg1 : i32, i32, i32
  }
  func.func @transform_2(%arg0: i32, %arg1: i32) -> (i32, i32, i32) {
    %c0_i32 = arith.constant 0 : i32
    %c0_i32_0 = arith.constant 0 : i32
    return %arg0, %c0_i32, %arg1 : i32, i32, i32
  }
  func.func @transform_3(%arg0: i32, %arg1: i32) -> (i32, i32, i32, i32) {
    %c0_i32 = arith.constant 0 : i32
    %c0_i32_0 = arith.constant 0 : i32
    %c0_i32_1 = arith.constant 0 : i32
    return %arg0, %arg1, %c0_i32, %c0_i32_0 : i32, i32, i32, i32
  }
}

</mosaic_0001>

<llo_original>
// kernel: tpu_custom_call.1
$region0: #{tpu_custom_call.1}
  #allocation0 [shape = 'u32[]', space=smem, size = 0x4, offset = 0x4, fixed_abs, tag = 'smem constant byte address 0x4 - core index']
  #allocation1 [shape = 'u32[144,128]{1,0:T(1,128)}', space=vmem, size = 0x12000, scoped, tag = 'internal scratch']
  %s0 = inlined_call_operand.hbm [shape: f32[2,4,256], index: 0, kind: input, shape index: {}]
  %s1 = inlined_call_operand.hbm [shape: bf16[2,4,256], index: 1, kind: input, shape index: {}]
  %s2 = inlined_call_operand.vmem [shape: s32[2,1,256], index: 2, kind: input, shape index: {}]
  %s3 = inlined_call_operand.vmem [shape: f32[2,1,5,128], index: 3, kind: output, shape index: {}]
  %s4 = sld [smem:[#allocation0]]
  $region53: #{tpu_custom_call.1} parent=0
    _
  %s6 = ssub.s32 1, %s4
  %s7 = scalar_select 0, %s6, %s4
  $region1: #{tpu_custom_call.1} parent=0
    #allocation2 [shape = 'u8[8192]{0}', space=vmem, size = 0x2000, scoped, tag = 'input window, operand 0']
    #allocation3 [shape = 's32[2]{0}', space=sflag, size = 0x8, scoped, tag = 'scoped memory for tpu_custom_call.1']
    #allocation4 [shape = 'u8[4096]{0}', space=vmem, size = 0x1000, scoped, tag = 'input window, operand 1']
    #allocation5 [shape = 's32[2]{0}', space=sflag, size = 0x8, scoped, tag = 'scoped memory for tpu_custom_call.1']
    %8 = vsyncpa [#allocation3], 0
    %s9 = scalar_lea.sflag [#allocation3], 1
    %10 = vsyncpa %s9, 0
    %11 = vsyncpa [#allocation5], 0
    %s12 = scalar_lea.sflag [#allocation5], 1
    %13 = vsyncpa %s12, 0
    loop: start=0, step=1, limit=4
    $region2: #{tpu_custom_call.1} parent=1 // loop_pre_header
      _
    $region3: #{tpu_custom_call.1} parent=1 // loop_header
      %s15 = sphi 0, %s19
      %p16 = scmp.ge.s32.totalorder %s15, 4
      %s22 = sphi 0, %s34
      %s23 = sphi 0, %s30
      %s24 = sphi 0, %s22
      %s25 = sphi 0, %s23
      %s26 = sphi 0, %s24
      %s27 = sphi 0, %s25
      %s39 = sphi 0, %s41
      %s42 = sphi 0, %s39
      %s43 = sphi 0, %s42
      %s59 = sphi 0, %s43
      %s67 = sphi 0, %s69
      %s70 = sphi 0, %s67
      %s71 = sphi 0, %s70
      %s87 = sphi 0, %s71
      %s95 = sphi 0, %s97
      %s98 = sphi 0, %s95
      %s99 = sphi 0, %s98
      %s115 = sphi 0, %s99
      %s123 = sphi 0, %s125
      %s126 = sphi 0, %s123
      %s127 = sphi 0, %s126
      %s143 = sphi 0, %s127
    $region4: #{tpu_custom_call.1} parent=1 // loop_header_branch
      %18 = sbr.rel (%p16) target = $region8
    $region5: #{tpu_custom_call.1} parent=1 // loop_body
      %s20 = ssub.s32 %s15, 1
      %s21 = ssub.s32 %s15, 2
      %s28 = sadd.s32 1, %s23
      %p29 = scmp.ge.s32.totalorder %s28, 1
      %s30 = scalar_select %p29, 0, %s28
      %s31 = sadd.s32 1, %s22
      %s32 = scalar_select %p29, %s31, %s22
      %p33 = scmp.ge.s32.totalorder %s32, 2
      %s34 = scalar_select %p33, 0, %s32
      %s35 = ssub.s32 %s22, %s34
      %s36 = ssub.s32 %s23, %s30
      %s37 = sor.u32 %s35, %s36
      %p38 = scmp.eq.s32.totalorder %s37, 0
      %s40 = sadd.s32 %s39, 1
      %s41 = scalar_select %p38, %s39, %s40
      %p44 = pneg %p38
      %p45 = scmp.eq.s32.totalorder %s15, 1
      %p46 = por %p44, %p45
      %p47 = scmp.ne.s32.totalorder %s39, %s42
      %p48 = scmp.eq.s32.totalorder %s15, 0
      %p49 = por %p47, %p48
      %p50 = scmp.ne.s32.totalorder %s39, %s42
      %p51 = scmp.eq.s32.totalorder %s20, 1
      %p52 = por %p50, %p51
      %p53 = scmp.ne.s32.totalorder %s42, %s43
      %p54 = scmp.eq.s32.totalorder %s20, 0
      %p55 = por %p53, %p54
      %p56 = scmp.ne.s32.totalorder %s42, %s43
      %p57 = scmp.eq.s32.totalorder %s21, 1
      %p58 = por %p56, %p57
      %p60 = scmp.ne.s32.totalorder %s43, %s59
      %p61 = scmp.eq.s32.totalorder %s21, 0
      %p62 = por %p60, %p61
      %s63 = ssub.s32 %s22, %s34
      %s64 = ssub.s32 %s23, %s30
      %s65 = sor.u32 %s63, %s64
      %p66 = scmp.eq.s32.totalorder %s65, 0
      %s68 = sadd.s32 %s67, 1
      %s69 = scalar_select %p66, %s67, %s68
      %p72 = pneg %p66
      %p73 = scmp.eq.s32.totalorder %s15, 1
      %p74 = por %p72, %p73
      %p75 = scmp.ne.s32.totalorder %s67, %s70
      %p76 = scmp.eq.s32.totalorder %s15, 0
      %p77 = por %p75, %p76
      %p78 = scmp.ne.s32.totalorder %s67, %s70
      %p79 = scmp.eq.s32.totalorder %s20, 1
      %p80 = por %p78, %p79
      %p81 = scmp.ne.s32.totalorder %s70, %s71
      %p82 = scmp.eq.s32.totalorder %s20, 0
      %p83 = por %p81, %p82
      %p84 = scmp.ne.s32.totalorder %s70, %s71
      %p85 = scmp.eq.s32.totalorder %s21, 1
      %p86 = por %p84, %p85
      %p88 = scmp.ne.s32.totalorder %s71, %s87
      %p89 = scmp.eq.s32.totalorder %s21, 0
      %p90 = por %p88, %p89
      %s91 = ssub.s32 %s22, %s34
      %s92 = ssub.s32 %s23, %s30
      %s93 = sor.u32 %s91, %s92
      %p94 = scmp.eq.s32.totalorder %s93, 0
      %s96 = sadd.s32 %s95, 1
      %s97 = scalar_select %p94, %s95, %s96
      %p100 = pneg %p94
      %p101 = scmp.eq.s32.totalorder %s15, 1
      %p102 = por %p100, %p101
      %p103 = scmp.ne.s32.totalorder %s95, %s98
      %p104 = scmp.eq.s32.totalorder %s15, 0
      %p105 = por %p103, %p104
      %p106 = scmp.ne.s32.totalorder %s95, %s98
      %p107 = scmp.eq.s32.totalorder %s20, 1
      %p108 = por %p106, %p107
      %p109 = scmp.ne.s32.totalorder %s98, %s99
      %p110 = scmp.eq.s32.totalorder %s20, 0
      %p111 = por %p109, %p110
      %p112 = scmp.ne.s32.totalorder %s98, %s99
      %p113 = scmp.eq.s32.totalorder %s21, 1
      %p114 = por %p112, %p113
      %p116 = scmp.ne.s32.totalorder %s99, %s115
      %p117 = scmp.eq.s32.totalorder %s21, 0
      %p118 = por %p116, %p117
      %s119 = ssub.s32 %s22, %s34
      %s120 = ssub.s32 %s23, %s30
      %s121 = sor.u32 %s119, %s120
      %p122 = scmp.eq.s32.totalorder %s121, 0
      %s124 = sadd.s32 %s123, 1
      %s125 = scalar_select %p122, %s123, %s124
      %p128 = pneg %p122
      %p129 = scmp.eq.s32.totalorder %s15, 1
      %p130 = por %p128, %p129
      %p131 = scmp.ne.s32.totalorder %s123, %s126
      %p132 = scmp.eq.s32.totalorder %s15, 0
      %p133 = por %p131, %p132
      %p134 = scmp.ne.s32.totalorder %s123, %s126
      %p135 = scmp.eq.s32.totalorder %s20, 1
      %p136 = por %p134, %p135
      %p137 = scmp.ne.s32.totalorder %s126, %s127
      %p138 = scmp.eq.s32.totalorder %s20, 0
      %p139 = por %p137, %p138
      %p140 = scmp.ne.s32.totalorder %s126, %s127
      %p141 = scmp.eq.s32.totalorder %s21, 1
      %p142 = por %p140, %p141
      %p144 = scmp.ne.s32.totalorder %s127, %s143
      %p145 = scmp.eq.s32.totalorder %s21, 0
      %p146 = por %p144, %p145
      %p147 = scmp.le.s32.totalorder 1, %s15
      %p148 = scmp.lt.s32.totalorder %s15, 3
      %p149 = pnand %p147, %p148
      %p150 = pneg %p149
      // Predicated region
      $region9: #{tpu_custom_call.1} parent=5 // pred_check
        _
      $region10: #{tpu_custom_call.1} parent=5 // pred_check_branch
        %152 = sbr.rel (%p149) target = $region12
      $region11: #{tpu_custom_call.1} parent=5 // pred_region
        %s153 = ssub.s32 %s15, 1
      $region12: #{tpu_custom_call.1} parent=5 // pred_fallthru
        _
      %p154 = scmp.lt.s32.totalorder %s15, 2
      // Predicated region
      $region13: #{tpu_custom_call.1} parent=5 // pred_check
        %p155 = pneg %p154
      $region14: #{tpu_custom_call.1} parent=5 // pred_check_branch
        %157 = sbr.rel (%p155) target = $region16
      $region15: #{tpu_custom_call.1} parent=5 // pred_region
        // Predicated region
        $region17: #{tpu_custom_call.1} parent=15 // pred_check
          %p158 = pneg %p49
        $region18: #{tpu_custom_call.1} parent=15 // pred_check_branch
          %160 = sbr.rel (%p158) target = $region20
        $region19: #{tpu_custom_call.1} parent=15 // pred_region
          %s161 = sand.u32 %s39, 1
          %s162 = scalar_lea.sflag [#allocation3], %s161
          %s163 = sand.u32 %s39, 1
          %s164 = smul.addr %s163, 8
          %s165 = scalar_lea.vmem [#allocation2], %s164
          %s166 = smul.u32 2, %s23
          %s168 = ssub.s32 128, 128
          %169 = vsyncadd %s162, %s168
          %s170 = smul.addr %s22, 2
          %s171 = sadd.s32 %s166, %s170
          %s172 = smul.addr %s171, 64
          %s173 = scalar_lea.hbm %s0, %s172
          %s175 = sshll.u32 %s165, 4
          %s176 = int_to_ptr.vmem [resolvable:$true] %s175
          %178 = dma.hbm_to_vmem [thread:$0]  %s173, 128, %s176, %s162
        $region20: #{tpu_custom_call.1} parent=15 // pred_fallthru
          _
        // Predicated region
        $region21: #{tpu_custom_call.1} parent=15 // pred_check
          %p179 = pneg %p77
        $region22: #{tpu_custom_call.1} parent=15 // pred_check_branch
          %181 = sbr.rel (%p179) target = $region24
        $region23: #{tpu_custom_call.1} parent=15 // pred_region
          %s182 = sand.u32 %s67, 1
          %s183 = scalar_lea.sflag [#allocation5], %s182
          %s184 = sand.u32 %s67, 1
          %s185 = smul.addr %s184, 4
          %s186 = scalar_lea.vmem [#allocation4], %s185
          %s187 = smul.u32 2, %s23
          %s189 = ssub.s32 64, 64
          %190 = vsyncadd %s183, %s189
          %s191 = smul.addr %s22, 2
          %s192 = sadd.s32 %s187, %s191
          %s193 = smul.addr %s192, 32
          %s194 = scalar_lea.hbm %s1, %s193
          %s196 = sshll.u32 %s186, 4
          %s197 = int_to_ptr.vmem [resolvable:$true] %s196
          %199 = dma.hbm_to_vmem [thread:$0]  %s194, 64, %s197, %s183
        $region24: #{tpu_custom_call.1} parent=15 // pred_fallthru
          _
        // Predicated region
        $region25: #{tpu_custom_call.1} parent=15 // pred_check
          %p200 = pneg %p105
        $region26: #{tpu_custom_call.1} parent=15 // pred_check_branch
          %202 = sbr.rel (%p200) target = $region28
        $region27: #{tpu_custom_call.1} parent=15 // pred_region
          %s203 = smul.u32 2, %s23
          %p204 = scmp.lt.s32.totalorder %s22, 1
          %s205 = scalar_select %p204, %s22, 1
          %p206 = scmp.lt.s32.totalorder %s203, 1
          %s207 = scalar_select %p206, %s203, 1
          %s208 = smul.addr %s205, 2
          %s209 = sadd.s32 %s207, %s208
          %s210 = scalar_lea.vmem %s2, %s209
          %s211 = smul.u32 2, %s23
        $region28: #{tpu_custom_call.1} parent=15 // pred_fallthru
          _
      $region16: #{tpu_custom_call.1} parent=5 // pred_fallthru
        _
      %p212 = scmp.le.s32.totalorder 1, %s15
      %p213 = scmp.lt.s32.totalorder %s15, 3
      %p214 = pnand %p212, %p213
      %p215 = pneg %p214
      // Predicated region
      $region29: #{tpu_custom_call.1} parent=5 // pred_check
        _
      $region30: #{tpu_custom_call.1} parent=5 // pred_check_branch
        %217 = sbr.rel (%p214) target = $region32
      $region31: #{tpu_custom_call.1} parent=5 // pred_region
        %s218 = ssub.s32 %s15, 1
        %s219 = sand.u32 %s42, 1
        %s220 = scalar_lea.sflag [#allocation3], %s219
        %s221 = sand.u32 %s42, 1
        %s222 = smul.addr %s221, 8
        %s223 = scalar_lea.vmem [#allocation2], %s222
        // Predicated region
        $region33: #{tpu_custom_call.1} parent=31 // pred_check
          %p224 = pneg %p55
        $region34: #{tpu_custom_call.1} parent=31 // pred_check_branch
          %226 = sbr.rel (%p224) target = $region36
        $region35: #{tpu_custom_call.1} parent=31 // pred_region
          %227 = dma.done %s220, 128
        $region36: #{tpu_custom_call.1} parent=31 // pred_fallthru
          _
        %s228 = sand.u32 %s70, 1
        %s229 = scalar_lea.sflag [#allocation5], %s228
        %s230 = sand.u32 %s70, 1
        %s231 = smul.addr %s230, 4
        %s232 = scalar_lea.vmem [#allocation4], %s231
        // Predicated region
        $region37: #{tpu_custom_call.1} parent=31 // pred_check
          %p233 = pneg %p83
        $region38: #{tpu_custom_call.1} parent=31 // pred_check_branch
          %235 = sbr.rel (%p233) target = $region40
        $region39: #{tpu_custom_call.1} parent=31 // pred_region
          %236 = dma.done %s229, 64
        $region40: #{tpu_custom_call.1} parent=31 // pred_fallthru
          _
        %s237 = sand.u32 %s42, 1
        %s238 = scalar_lea.sflag [#allocation3], %s237
        %s239 = sand.u32 %s42, 1
        %s240 = smul.addr %s239, 8
        %s241 = scalar_lea.vmem [#allocation2], %s240
        %p242 = pneg %p55
        %p243 = pneg %p52
        %s244 = sand.u32 %s70, 1
        %s245 = scalar_lea.sflag [#allocation5], %s244
        %s246 = sand.u32 %s70, 1
        %s247 = smul.addr %s246, 4
        %s248 = scalar_lea.vmem [#allocation4], %s247
        %p249 = pneg %p83
        %p250 = pneg %p80
        %s251 = smul.u32 2, %s25
        %p252 = scmp.lt.s32.totalorder %s24, 1
        %s253 = scalar_select %p252, %s24, 1
        %p254 = scmp.lt.s32.totalorder %s251, 1
        %s255 = scalar_select %p254, %s251, 1
        %s256 = smul.addr %s253, 2
        %s257 = sadd.s32 %s255, %s256
        %s258 = scalar_lea.vmem %s2, %s257
        %p259 = pneg %p111
        %p260 = pneg %p108
        %p261 = pneg %p139
        %p262 = pneg %p136
        %p263 = scmp.lt.s32.totalorder %s24, 1
        %s264 = scalar_select %p263, %s24, 1
        %p265 = scmp.lt.s32.totalorder %s25, 0
        %s266 = scalar_select %p265, %s25, 0
        %s267 = sadd.s32 %s266, %s264
        %s268 = smul.addr %s267, 8
        %s269 = scalar_lea.vmem %s3, %s268
        %s270 = smul.u32 2, %s25
        %s271 = smul.u32 2, %s25
        %s272 = smul.u32 2, %s25
        %p273 = scmp.lt.s32.totalorder %s24, 1
        %s274 = scalar_select %p273, %s24, 1
        %p275 = scmp.lt.s32.totalorder %s272, 1
        %s276 = scalar_select %p275, %s272, 1
        %s277 = smul.addr %s274, 2
        %s278 = sadd.s32 %s276, %s277
        %s279 = scalar_lea.vmem %s2, %s278
        %s280 = smul.u32 2, %s25
        %p281 = scmp.lt.s32.totalorder %s24, 1
        %s282 = scalar_select %p281, %s24, 1
        %p283 = scmp.lt.s32.totalorder %s25, 0
        %s284 = scalar_select %p283, %s25, 0
        %s285 = sadd.s32 %s284, %s282
        %s286 = smul.addr %s285, 8
        %s287 = scalar_lea.vmem %s3, %s286
        %v288 = vlaneseq
        %v289 = vshrl.u32 %v288, 7
        %v290 = vld [vmem:[%s223] sm:$0xf]
        %v291 = vld [vmem:[%s232] sm:$0x3]
        %v292 = vunpack.c.l.bf16 %v291
        %v293 = vld [vmem:[%s279] sm:$0x1]
        %vm294 = vcmask 1043456
        %v295 = vsel %vm294, %v290, -inf
        %v296 = vrot.slane %v295, 4
        %v297 = vmax.f32 %v295, %v296
        %v298 = vrot.slane %v297, 2
        %v299 = vmax.f32 %v297, %v298
        %v300 = vrot.slane %v299, 1
        %v301 = vmax.f32 %v299, %v300
        %v302 = vsub.f32 %v290, %v301
        %v303 = vmul.f32 %v302, 1.442695
        %v304 = vpow.pop %v303
        %v305 = vsel %vm294, %v304, 0.0
        %v306 = vrot.slane %v305, 4
        %v307 = vadd.f32 %v305, %v306
        %v308 = vrot.slane %v307, 2
        %v309 = vadd.f32 %v307, %v308
        %v310 = vrot.slane %v309, 1
        %v311 = vadd.f32 %v309, %v310
        %v312 = vrcp.pop %v311
        %v313 = vmul.f32 %v304, %v292
        %v314 = vmul.f32 %v313, %v312
        %v315 = vadd.f32 %v314, 0.0
        %v316 = vlaneseq
        %v317 = vshrl.u32 %v316, 7
        %v318 = vsub.s32 0, %v317
        %v319 = vrot.slane %v293, %v318
        %vm320 = vcmp.eq.s32.totalorder %v289, %v319
        %v321 = vsel %vm320, %v304, 0.0
        %v322 = vsel %vm294, %v321, 0.0
        %v323 = vrot.slane %v322, 4
        %v324 = vadd.f32 %v322, %v323
        %v325 = vrot.slane %v324, 2
        %v326 = vadd.f32 %v324, %v325
        %v327 = vrot.slane %v326, 1
        %v328 = vadd.f32 %v326, %v327
        %v329 = vmul.f32 %v328, %v312
        %v330 = vadd.f32 %v329, 1e-15
        %v331 = vlog2.pop %v330
        %v332 = vmul.f32 %v331, 0.6931472
        %v333 = vadd.f32 %v332, 0.0
        %v334 = vld [vmem:[%s223 + $0x4] sm:$0xf]
        %v335 = vld [vmem:[%s232 + $0x2] sm:$0x3]
        %v336 = vunpack.c.l.bf16 %v335
        %v337 = vld [vmem:[%s279 + $0x1] sm:$0x1]
        %v338 = vsel %vm294, %v334, -inf
        %v339 = vrot.slane %v338, 4
        %v340 = vmax.f32 %v338, %v339
        %v341 = vrot.slane %v340, 2
        %v342 = vmax.f32 %v340, %v341
        %v343 = vrot.slane %v342, 1
        %v344 = vmax.f32 %v342, %v343
        %v345 = vsub.f32 %v334, %v344
        %v346 = vmul.f32 %v345, 1.442695
        %v347 = vpow.pop %v346
        %v348 = vsel %vm294, %v347, 0.0
        %v349 = vrot.slane %v348, 4
        %v350 = vadd.f32 %v348, %v349
        %v351 = vrot.slane %v350, 2
        %v352 = vadd.f32 %v350, %v351
        %v353 = vrot.slane %v352, 1
        %v354 = vadd.f32 %v352, %v353
        %v355 = vrcp.pop %v354
        %v356 = vmul.f32 %v347, %v336
        %v357 = vmul.f32 %v356, %v355
        %v358 = vadd.f32 %v315, %v357
        %v359 = vlaneseq
        %v360 = vshrl.u32 %v359, 7
        %v361 = vsub.s32 0, %v360
        %v362 = vrot.slane %v337, %v361
        %vm363 = vcmp.eq.s32.totalorder %v289, %v362
        %v364 = vsel %vm363, %v347, 0.0
        %v365 = vsel %vm294, %v364, 0.0
        %v366 = vrot.slane %v365, 4
        %v367 = vadd.f32 %v365, %v366
        %v368 = vrot.slane %v367, 2
        %v369 = vadd.f32 %v367, %v368
        %v370 = vrot.slane %v369, 1
        %v371 = vadd.f32 %v369, %v370
        %v372 = vmul.f32 %v371, %v355
        %v373 = vadd.f32 %v372, 1e-15
        %v374 = vlog2.pop %v373
        %v375 = vmul.f32 %v374, 0.6931472
        %v376 = vadd.f32 %v333, %v375
        %v377 = vsel %vm294, %v358, %v376
        %378 = vst [vmem:[%s287] sm:$0x1f] %v377
        %p379 = scmp.lt.s32.totalorder %s24, 1
        %s380 = scalar_select %p379, %s24, 1
        %p381 = scmp.lt.s32.totalorder %s25, 0
        %s382 = scalar_select %p381, %s25, 0
        %s383 = sadd.s32 %s382, %s380
        %s384 = smul.addr %s383, 8
        %s385 = scalar_lea.vmem %s3, %s384
        // Predicated region
        $region41: #{tpu_custom_call.1} parent=31 // pred_check
          %p386 = pneg %p136
        $region42: #{tpu_custom_call.1} parent=31 // pred_check_branch
          %388 = sbr.rel (%p386) target = $region44
        $region43: #{tpu_custom_call.1} parent=31 // pred_region
          _
        $region44: #{tpu_custom_call.1} parent=31 // pred_fallthru
          _
      $region32: #{tpu_custom_call.1} parent=5 // pred_fallthru
        _
      %p389 = scmp.le.s32.totalorder 2, %s15
      // Predicated region
      $region45: #{tpu_custom_call.1} parent=5 // pred_check
        %p390 = pneg %p389
      $region46: #{tpu_custom_call.1} parent=5 // pred_check_branch
        %392 = sbr.rel (%p390) target = $region48
      $region47: #{tpu_custom_call.1} parent=5 // pred_region
        %s393 = ssub.s32 %s15, 2
        // Predicated region
        $region49: #{tpu_custom_call.1} parent=47 // pred_check
          %p394 = pneg %p142
        $region50: #{tpu_custom_call.1} parent=47 // pred_check_branch
          %396 = sbr.rel (%p394) target = $region52
        $region51: #{tpu_custom_call.1} parent=47 // pred_region
          %p397 = scmp.lt.s32.totalorder %s26, 1
          %s398 = scalar_select %p397, %s26, 1
          %p399 = scmp.lt.s32.totalorder %s27, 0
          %s400 = scalar_select %p399, %s27, 0
          %s401 = sadd.s32 %s400, %s398
          %s402 = smul.addr %s401, 8
          %s403 = scalar_lea.vmem %s3, %s402
        $region52: #{tpu_custom_call.1} parent=47 // pred_fallthru
          _
      $region48: #{tpu_custom_call.1} parent=5 // pred_fallthru
        _
    $region6: #{tpu_custom_call.1} parent=1 // loop_footer
      %s19 = sadd.s32 1, %s15
    $region7: #{tpu_custom_call.1} parent=1 // loop_footer_branch
      %14 = sbr.rel target = $region3
    $region8: #{tpu_custom_call.1} parent=1 // loop_exit
      _
    %404 = vsyncpa [#allocation3], 1
    %s405 = scalar_lea.sflag [#allocation3], 1
    %406 = vsyncpa %s405, 1
    %407 = vsyncpa [#allocation5], 1
    %s408 = scalar_lea.sflag [#allocation5], 1
    %409 = vsyncpa %s408, 1

</llo_original>
